<compile_context>
chip_gen: v6e
topology: v6e:2x2x1
jax: 0.10.0
libtpu: 0.0.40
codegen_flags: <defaults>
</compile_context>

<pallas_src>
import math

import jax
import jax.numpy as jnp
from jax.experimental import pallas as pl
from jax.experimental.pallas import tpu as pltpu


# ----------------------------------------------------------------------------
# Compiler params: derive the VMEM budget per chip (v5e/v6e: 128 MiB, v7x: 64 MiB)
# ----------------------------------------------------------------------------
def _derive_compiler_params():
    try:
        cap = int(pltpu.get_tpu_info().vmem_capacity_bytes)
    except Exception:
        cap = 64 * 1024 * 1024  # conservative (v7x-sized) fallback
    limit = max(32 * 1024 * 1024,
                min(cap * 3 // 4, cap - 16 * 1024 * 1024, 96 * 1024 * 1024))
    return pltpu.CompilerParams(vmem_limit_bytes=limit,
                                dimension_semantics=("arbitrary",))


_PARAMS = _derive_compiler_params()


# ----------------------------------------------------------------------------
# pallas_call helper: single grid step, full-array blocks (everything is tiny)
# ----------------------------------------------------------------------------
def _pcall(kernel, inputs, out_shape, scratch_shapes=()):
    in_specs = [pl.BlockSpec(a.shape, (lambda i, nd=a.ndim: (0,) * nd)) for a in inputs]
    out_specs = pl.BlockSpec(out_shape.shape,
                             (lambda i, nd=len(out_shape.shape): (0,) * nd))
    return pl.pallas_call(
        kernel,
        out_shape=out_shape,
        grid=(1,),
        in_specs=in_specs,
        out_specs=out_specs,
        scratch_shapes=list(scratch_shapes),
        compiler_params=_PARAMS,
    )(*inputs)


# ----------------------------------------------------------------------------
# In-kernel building blocks (operate on values / refs inside a kernel body)
# ----------------------------------------------------------------------------
def _bn(x, g, b, eps=1e-5):
    """Training-mode BatchNorm over rows (biased variance), f32 throughout."""
    mean = jnp.mean(x, axis=0, keepdims=True)
    var = jnp.mean(jnp.square(x - mean), axis=0, keepdims=True)
    return (x - mean) * jax.lax.rsqrt(var + eps) * g + b


def _conv3x3_rows(src, pad_ref, w_ref, n, oh, ow, cin):
    """3x3 / stride-1 / pad-1 conv on a row-major (n*oh*ow, cin) activation.

    src:     f32 value of shape (rows, cin), rows = n*oh*ow (NHWC row order).
    pad_ref: VMEM scratch (rows + 2*(ow+1), cin) used for shifted-row taps.
    w_ref:   (9*cin, cout) bf16 weights, tap-major / channel-fastest.
    Returns f32 (rows, cout) accumulated on the MXU.
    """
    rows = n * oh * ow
    cout = w_ref.shape[1]
    pad = ow + 1

    pad_ref[...] = jnp.zeros_like(pad_ref)
    pad_ref[pad:pad + rows, :] = src

    r = jax.lax.broadcasted_iota(jnp.int32, (rows, 1), 0)
    xq = r % ow
    yq = (r // ow) % oh

    acc = jnp.zeros((rows, cout), jnp.float32)
    for di in range(3):
        for dj in range(3):
            start = pad + (di - 1) * ow + (dj - 1)
            tap = pad_ref[start:start + rows, :]
            # Mask rows whose (y+di-1, x+dj-1) falls outside the image (this also
            # kills any cross-image contamination of the row shift).
            conds = []
            if di == 0:
                conds.append(yq >= 1)
            if di == 2:
                conds.append(yq <= oh - 2)
            if dj == 0:
                conds.append(xq >= 1)
            if dj == 2:
                conds.append(xq <= ow - 2)
            if conds:
                m = conds[0]
                for c in conds[1:]:
                    m = jnp.logical_and(m, c)
                tap = jnp.where(m, tap, 0.0)
            t = di * 3 + dj
            acc = acc + jnp.dot(tap.astype(jnp.bfloat16),
                                w_ref[t * cin:(t + 1) * cin, :],
                                preferred_element_type=jnp.float32)
    return acc


# ----------------------------------------------------------------------------
# Fused BasicBlock kernels (one pallas_call per residual block)
# ----------------------------------------------------------------------------
def _make_block_kernel_s1(n, oh, ow, cin, planes, has_down):
    """stride-1 block: conv1 taps computed in-kernel from the raw (rows, cin) input."""

    def kernel(*refs):
        if has_down:
            (x_ref, w1_ref, g1_ref, b1_ref, w2_ref, g2_ref, b2_ref,
             wd_ref, gd_ref, bd_ref, o_ref, pad1_ref, pad2_ref) = refs
        else:
            (x_ref, w1_ref, g1_ref, b1_ref, w2_ref, g2_ref, b2_ref,
             o_ref, pad1_ref, pad2_ref) = refs

        x = x_ref[...]                                             # (rows, cin) f32
        y = _conv3x3_rows(x, pad1_ref, w1_ref, n, oh, ow, cin)     # conv1
        y = jnp.maximum(_bn(y, g1_ref[...], b1_ref[...]), 0.0)     # bn1 + relu
        y = _conv3x3_rows(y, pad2_ref, w2_ref, n, oh, ow, planes)  # conv2
        y = _bn(y, g2_ref[...], b2_ref[...])                       # bn2

        if has_down:
            idn = jnp.dot(x.astype(jnp.bfloat16), wd_ref[...],
                          preferred_element_type=jnp.float32)
            idn = _bn(idn, gd_ref[...], bd_ref[...])
        else:
            idn = x                                                # cin == planes
        o_ref[...] = jnp.maximum(y + idn, 0.0)

    return kernel


def _make_block_kernel_s2(n, oh, ow, cin, planes):
    """stride-2 block: conv1 uses wrapper im2col patches (tiny), conv2 in-kernel."""

    def kernel(p1_ref, xs_ref, w1_ref, g1_ref, b1_ref,
               w2_ref, g2_ref, b2_ref, wd_ref, gd_ref, bd_ref,
               o_ref, pad2_ref):
        y = jnp.dot(p1_ref[...].astype(jnp.bfloat16), w1_ref[...],
                    preferred_element_type=jnp.float32)            # conv1 (stride 2)
        y = jnp.maximum(_bn(y, g1_ref[...], b1_ref[...]), 0.0)     # bn1 + relu
        y = _conv3x3_rows(y, pad2_ref, w2_ref, n, oh, ow, planes)  # conv2
        y = _bn(y, g2_ref[...], b2_ref[...])                       # bn2

        idn = jnp.dot(xs_ref[...].astype(jnp.bfloat16), wd_ref[...],
                      preferred_element_type=jnp.float32)          # downsample conv
        idn = _bn(idn, gd_ref[...], bd_ref[...])
        o_ref[...] = jnp.maximum(y + idn, 0.0)

    return kernel


# ----------------------------------------------------------------------------
# Wrapper glue: im2col (only for strided convs / stem), block / stem / pool / head
# ----------------------------------------------------------------------------
def _im2col(x_nhwc, k, stride, padding):
    N, H, W, C = x_nhwc.shape
    if padding > 0:
        x_nhwc = jnp.pad(x_nhwc, ((0, 0), (padding, padding), (padding, padding), (0, 0)))
    oh = (H + 2 * padding - k) // stride + 1
    ow = (W + 2 * padding - k) // stride + 1
    cols = []
    for i in range(k):
        for j in range(k):
            cols.append(x_nhwc[:, i:i + stride * oh:stride, j:j + stride * ow:stride, :])
    patches = jnp.concatenate(cols, axis=-1)          # (N, oh, ow, k*k*C)
    return patches.reshape(N * oh * ow, k * k * C), (N, oh, ow)


def basic_block_forward(x_nhwc, bp):
    n, h, w, cin = x_nhwc.shape
    s = bp['stride']
    planes = bp['bn1_g'].shape[1]
    oh = (h + 2 - 3) // s + 1
    ow = (w + 2 - 3) // s + 1
    rows = n * oh * ow
    has_down = 'down_w' in bp
    out_sds = jax.ShapeDtypeStruct((rows, planes), jnp.float32)

    if s == 1:
        x2d = x_nhwc.reshape(n * h * w, cin)
        inputs = [x2d, bp['conv1_w'], bp['bn1_g'], bp['bn1_b'],
                  bp['conv2_w'], bp['bn2_g'], bp['bn2_b']]
        if has_down:
            inputs += [bp['down_w'], bp['down_g'], bp['down_b']]
        scratch = [pltpu.VMEM((rows + 2 * (ow + 1), cin), jnp.float32),
                   pltpu.VMEM((rows + 2 * (ow + 1), planes), jnp.float32)]
        kernel = _make_block_kernel_s1(n, oh, ow, cin, planes, has_down)
    else:
        p1, _ = _im2col(x_nhwc, 3, 2, 1)                          # (rows, 9*cin)
        xsub = x_nhwc[:, 0:h:2, 0:w:2, :].reshape(rows, cin)       # 1x1 stride-2 taps
        inputs = [p1, xsub, bp['conv1_w'], bp['bn1_g'], bp['bn1_b'],
                  bp['conv2_w'], bp['bn2_g'], bp['bn2_b'],
                  bp['down_w'], bp['down_g'], bp['down_b']]
        scratch = [pltpu.VMEM((rows + 2 * (ow + 1), planes), jnp.float32)]
        kernel = _make_block_kernel_s2(n, oh, ow, cin, planes)

    out2d = _pcall(kernel, inputs, out_sds, scratch)
    return out2d.reshape(n, oh, ow, planes)


def stem_forward(x_nhwc, params):
    """conv1 (7x7 s2 p3, K padded 49->64) + BN1 + ReLU fused in one kernel."""
    patches, (n, oh, ow) = _im2col(x_nhwc, 7, 2, 3)                # (rows, 49)
    kpad = params['conv1_w'].shape[0]
    patches = jnp.pad(patches, ((0, 0), (0, kpad - patches.shape[1])))
    cout = params['conv1_w'].shape[1]

    def kernel(p_ref, w_ref, g_ref, b_ref, o_ref):
        y = jnp.dot(p_ref[...].astype(jnp.bfloat16), w_ref[...],
                    preferred_element_type=jnp.float32)
        o_ref[...] = jnp.maximum(_bn(y, g_ref[...], b_ref[...]), 0.0)

    out = _pcall(kernel,
                 [patches, params['conv1_w'], params['bn1_g'], params['bn1_b']],
                 jax.ShapeDtypeStruct((n * oh * ow, cout), jnp.float32))
    return out.reshape(n, oh, ow, cout)


def maxpool_3x3_s2_p1(x_nhwc):
    """MaxPool 3x3/s2/p1: pass the 4 stride-2 phases, take the 9-tap max in VMEM."""
    n, hh, ww, c = x_nhwc.shape
    oh = (hh + 2 - 3) // 2 + 1
    ow = (ww + 2 - 3) // 2 + 1
    neg = jnp.finfo(x_nhwc.dtype).min
    xp = jnp.pad(x_nhwc, ((0, 0), (1, 1), (1, 1), (0, 0)), constant_values=neg)
    phases = [xp[:, p::2, q::2, :] for p in (0, 1) for q in (0, 1)]

    def kernel(p00_ref, p01_ref, p10_ref, p11_ref, o_ref):
        ph = ((p00_ref, p01_ref), (p10_ref, p11_ref))
        res = None
        for di in range(3):
            for dj in range(3):
                src = ph[di % 2][dj % 2]
                v = src[:, di // 2:di // 2 + oh, dj // 2:dj // 2 + ow, :]
                res = v if res is None else jnp.maximum(res, v)
        o_ref[...] = res

    return _pcall(kernel, phases, jax.ShapeDtypeStruct((n, oh, ow, c), jnp.float32))


def head_forward(pooled, fc_w, fc_b):
    """Linear + bias + sigmoid fused in one kernel."""
    m = pooled.shape[0]
    ncls = fc_w.shape[1]

    def kernel(x_ref, w_ref, b_ref, o_ref):
        logits = jnp.dot(x_ref[...].astype(jnp.bfloat16), w_ref[...],
                         preferred_element_type=jnp.float32) + b_ref[...]
        o_ref[...] = jax.nn.sigmoid(logits)

    return _pcall(kernel, [pooled, fc_w, fc_b],
                  jax.ShapeDtypeStruct((m, ncls), jnp.float32))


# ----------------------------------------------------------------------------
# Parameters (deterministic init matching ResNetEncoder(BasicBlock, [2,2,2,2]))
# ----------------------------------------------------------------------------
def init_params(key, layers=(2, 2, 2, 2), num_classes=16):
    keys = jax.random.split(key, 256)
    idx = [0]

    def nk():
        k = keys[idx[0]]
        idx[0] += 1
        return k

    def conv_w(cin, cout, k):
        # kaiming_normal_(mode='fan_out', nonlinearity='relu'): std = sqrt(2/(k*k*cout))
        std = math.sqrt(2.0 / (k * k * cout))
        w = jax.random.normal(nk(), (k, k, cin, cout), jnp.float32) * std
        # flatten to (k*k*cin, cout), tap-major / channel-fastest; stored bf16 for MXU
        return w.reshape(k * k * cin, cout).astype(jnp.bfloat16)

    def bn(c):
        return jnp.ones((1, c), jnp.float32), jnp.zeros((1, c), jnp.float32)

    w0 = conv_w(1, 32, 7)                                   # (49, 32)
    params = {'conv1_w': jnp.pad(w0, ((0, 15), (0, 0)))}    # pad K 49 -> 64 (aligned)
    params['bn1_g'], params['bn1_b'] = bn(32)

    inplanes = 32
    plane_cfg = [(64, 1), (128, 2), (256, 2), (512, 2)]
    layer_params = []
    for (planes, stride), nblocks in zip(plane_cfg, layers):
        blocks = []
        for bi in range(nblocks):
            s = stride if bi == 0 else 1
            bp = {'stride': s,
                  'conv1_w': conv_w(inplanes, planes, 3),
                  'conv2_w': conv_w(planes, planes, 3)}
            bp['bn1_g'], bp['bn1_b'] = bn(planes)
            bp['bn2_g'], bp['bn2_b'] = bn(planes)
            if s != 1 or inplanes != planes:
                bp['down_w'] = conv_w(inplanes, planes, 1)
                bp['down_g'], bp['down_b'] = bn(planes)
            blocks.append(bp)
            inplanes = planes
        layer_params.append(blocks)
    params['layers'] = layer_params

    bound = 1.0 / math.sqrt(512)
    params['fc_w'] = jax.random.uniform(nk(), (512, num_classes), jnp.float32,
                                        -bound, bound).astype(jnp.bfloat16)
    params['fc_b'] = jax.random.uniform(nk(), (1, num_classes), jnp.float32,
                                        -bound, bound)
    return params


# ----------------------------------------------------------------------------
# Forward pass (public I/O in NCHW to match PyTorch; internal compute is NHWC)
# ----------------------------------------------------------------------------
def resnet_encoder_forward(x_nchw, params):
    x = jnp.transpose(x_nchw, (0, 2, 3, 1)).astype(jnp.float32)   # -> NHWC

    out1 = stem_forward(x, params)                                # (N,16,16,32)
    h = maxpool_3x3_s2_p1(out1)                                   # (N, 8, 8,32)

    feats = []
    for blocks in params['layers']:
        for bp in blocks:
            h = basic_block_forward(h, bp)                        # one fused call/block
        feats.append(h)
    out2, out3, out4, out5 = feats

    # AdaptiveAvgPool2d((1,1)) -> flatten (out5 is 1x1 spatial here)
    pooled = jnp.mean(out5, axis=(1, 2))                          # (N, 512)
    probs = head_forward(pooled, params['fc_w'], params['fc_b'])  # sigmoid(Wx + b)

    to_nchw = lambda t: jnp.transpose(t, (0, 3, 1, 2))
    return (probs, to_nchw(out5), to_nchw(out4), to_nchw(out3),
            to_nchw(out2), to_nchw(out1))


# ----------------------------------------------------------------------------
if __name__ == "__main__":
    key = jax.random.PRNGKey(0)
    kp, kx = jax.random.split(key)
    params = init_params(kp, layers=(2, 2, 2, 2), num_classes=16)
    # conv1 expects 1 input channel (NCHW), as in the ResUNet spec
    x = jax.random.normal(kx, (2, 1, 32, 32), jnp.float32)

    outs = resnet_encoder_forward(x, params)
    outs = jax.block_until_ready(outs)

    assert outs[0].shape == (2, 16)
    assert outs[1].shape == (2, 512, 1, 1)
    assert outs[2].shape == (2, 256, 2, 2)
    assert outs[3].shape == (2, 128, 4, 4)
    assert outs[4].shape == (2, 64, 8, 8)
    assert outs[5].shape == (2, 32, 16, 16)
    assert bool(jnp.all(jnp.isfinite(outs[0])))
    print("KERNEL_OK")
</pallas_src>

<mosaic_0001>
module attributes {stable_mosaic.version = 11 : i64} {
  func.func @kernel(%arg0: i32, %arg1: memref<512x64xf32, #tpu.memory_space<vmem>>, %arg2: memref<64x32xbf16, #tpu.memory_space<vmem>>, %arg3: memref<1x32xf32, #tpu.memory_space<vmem>>, %arg4: memref<1x32xf32, #tpu.memory_space<vmem>>, %arg5: memref<512x32xf32, #tpu.memory_space<vmem>>) attributes {dimension_semantics = [#tpu.dimension_semantics<arbitrary>], iteration_bounds = array<i64: 1>, scalar_prefetch = 0 : i64, scratch_operands = 0 : i64, tpu.core_type = #tpu.core_type<tc>, window_params = [{pipeline_mode = #tpu.pipeline_mode<synchronous>, transform_indices = @transform_0, window_bounds = array<i64: 512, 64>}, {pipeline_mode = #tpu.pipeline_mode<synchronous>, transform_indices = @transform_1, window_bounds = array<i64: 64, 32>}, {pipeline_mode = #tpu.pipeline_mode<synchronous>, transform_indices = @transform_2, window_bounds = array<i64: 1, 32>}, {pipeline_mode = #tpu.pipeline_mode<synchronous>, transform_indices = @transform_3, window_bounds = array<i64: 1, 32>}, {pipeline_mode = #tpu.pipeline_mode<synchronous>, transform_indices = @transform_4, window_bounds = array<i64: 512, 32>}]} {
    %c0 = arith.constant 0 : index
    %c0_0 = arith.constant 0 : index
    %0 = vector.load %arg1[%c0, %c0_0] : memref<512x64xf32, #tpu.memory_space<vmem>>, vector<512x64xf32>
    %1 = arith.truncf %0 : vector<512x64xf32> to vector<512x64xbf16>
    %c0_1 = arith.constant 0 : index
    %c0_2 = arith.constant 0 : index
    %2 = vector.load %arg2[%c0_1, %c0_2] : memref<64x32xbf16, #tpu.memory_space<vmem>>, vector<64x32xbf16>
    %cst = arith.constant dense<0.000000e+00> : vector<512x32xf32>
    %3 = tpu.matmul %1, %2, %cst {dimension_numbers = #tpu.dot_dimension_numbers<[1], [0], [0], [1], [0, 0, 1, 1], [], []>} : vector<512x64xbf16>, vector<64x32xbf16>, vector<512x32xf32> -> vector<512x32xf32>
    %c0_3 = arith.constant 0 : index
    %c0_4 = arith.constant 0 : index
    %4 = vector.load %arg3[%c0_3, %c0_4] : memref<1x32xf32, #tpu.memory_space<vmem>>, vector<1x32xf32>
    %c0_5 = arith.constant 0 : index
    %c0_6 = arith.constant 0 : index
    %5 = vector.load %arg4[%c0_5, %c0_6] : memref<1x32xf32, #tpu.memory_space<vmem>>, vector<1x32xf32>
    %cst_7 = arith.constant dense<0.000000e+00> : vector<32xf32>
    %6 = vector.multi_reduction <add>, %3, %cst_7 [0] : vector<512x32xf32> to vector<32xf32>
    %7 = vector.shape_cast %6 : vector<32xf32> to vector<1x32xf32>
    %cst_8 = arith.constant 5.120000e+02 : f32
    %8 = vector.broadcast %cst_8 : f32 to vector<1x32xf32>
    %9 = arith.divf %7, %8 : vector<1x32xf32>
    %10 = vector.broadcast %9 : vector<1x32xf32> to vector<512x32xf32>
    %11 = arith.subf %3, %10 : vector<512x32xf32>
    %12 = arith.mulf %11, %11 : vector<512x32xf32>
    %cst_9 = arith.constant dense<0.000000e+00> : vector<32xf32>
    %13 = vector.multi_reduction <add>, %12, %cst_9 [0] : vector<512x32xf32> to vector<32xf32>
    %14 = vector.shape_cast %13 : vector<32xf32> to vector<1x32xf32>
    %cst_10 = arith.constant 5.120000e+02 : f32
    %15 = vector.broadcast %cst_10 : f32 to vector<1x32xf32>
    %16 = arith.divf %14, %15 : vector<1x32xf32>
    %17 = vector.broadcast %9 : vector<1x32xf32> to vector<512x32xf32>
    %18 = arith.subf %3, %17 : vector<512x32xf32>
    %cst_11 = arith.constant 9.99999974E-6 : f32
    %19 = vector.broadcast %cst_11 : f32 to vector<1x32xf32>
    %20 = arith.addf %16, %19 : vector<1x32xf32>
    %21 = math.rsqrt %20 : vector<1x32xf32>
    %22 = vector.broadcast %21 : vector<1x32xf32> to vector<512x32xf32>
    %23 = arith.mulf %18, %22 : vector<512x32xf32>
    %24 = vector.broadcast %4 : vector<1x32xf32> to vector<512x32xf32>
    %25 = arith.mulf %23, %24 : vector<512x32xf32>
    %26 = vector.broadcast %5 : vector<1x32xf32> to vector<512x32xf32>
    %27 = arith.addf %25, %26 : vector<512x32xf32>
    %cst_12 = arith.constant 0.000000e+00 : f32
    %28 = vector.broadcast %cst_12 : f32 to vector<512x32xf32>
    %29 = arith.maximumf %27, %28 : vector<512x32xf32>
    %c0_13 = arith.constant 0 : index
    %c0_14 = arith.constant 0 : index
    %30 = vector.load %arg5[%c0_13, %c0_14] : memref<512x32xf32, #tpu.memory_space<vmem>>, vector<512x32xf32>
    tpu.vector_store %arg5[%c0_13, %c0_14], %29 {strides = array<i32>} : memref<512x32xf32, #tpu.memory_space<vmem>>, vector<512x32xf32>,
    return
  }
  func.func @transform_0(%arg0: i32) -> (i32, i32) {
    %c0_i32 = arith.constant 0 : i32
    %c0_i32_0 = arith.constant 0 : i32
    %c0_i32_1 = arith.constant 0 : i32
    return %c0_i32, %c0_i32_0 : i32, i32
  }
  func.func @transform_1(%arg0: i32) -> (i32, i32) {
    %c0_i32 = arith.constant 0 : i32
    %c0_i32_0 = arith.constant 0 : i32
    %c0_i32_1 = arith.constant 0 : i32
    return %c0_i32, %c0_i32_0 : i32, i32
  }
  func.func @transform_2(%arg0: i32) -> (i32, i32) {
    %c0_i32 = arith.constant 0 : i32
    %c0_i32_0 = arith.constant 0 : i32
    %c0_i32_1 = arith.constant 0 : i32
    return %c0_i32, %c0_i32_0 : i32, i32
  }
  func.func @transform_3(%arg0: i32) -> (i32, i32) {
    %c0_i32 = arith.constant 0 : i32
    %c0_i32_0 = arith.constant 0 : i32
    %c0_i32_1 = arith.constant 0 : i32
    return %c0_i32, %c0_i32_0 : i32, i32
  }
  func.func @transform_4(%arg0: i32) -> (i32, i32) {
    %c0_i32 = arith.constant 0 : i32
    %c0_i32_0 = arith.constant 0 : i32
    %c0_i32_1 = arith.constant 0 : i32
    return %c0_i32, %c0_i32_0 : i32, i32
  }
}

</mosaic_0001>

<llo_original>
// kernel: tpu_custom_call.1
$region0: #{tpu_custom_call.1}
  #allocation0 [shape = 'u32[]', space=smem, size = 0x4, offset = 0x4, fixed_abs, tag = 'smem constant byte address 0x4 - core index']
  #allocation1 [shape = 'u32[144,128]{1,0:T(1,128)}', space=vmem, size = 0x12000, scoped, tag = 'internal scratch']
  %s0 = inlined_call_operand.vmem [shape: f32[512,64], index: 0, kind: input, shape index: {}]
  %s1 = inlined_call_operand.vmem [shape: bf16[64,32], index: 1, kind: input, shape index: {}]
  %s2 = inlined_call_operand.vmem [shape: f32[1,32], index: 2, kind: input, shape index: {}]
  %s3 = inlined_call_operand.vmem [shape: f32[1,32], index: 3, kind: input, shape index: {}]
  %s4 = inlined_call_operand.vmem [shape: f32[512,32], index: 4, kind: output, shape index: {}]
  %s5 = sld [smem:[#allocation0]]
  $region26: #{tpu_custom_call.1} parent=0
    _
  %s7 = ssub.s32 1, %s5
  %s8 = scalar_select 0, %s7, %s5
  // Predicated region
  $region2: #{tpu_custom_call.1} parent=0 // pred_check
    _
  $region3: #{tpu_custom_call.1} parent=0 // pred_check_branch
    %10 = sbr.rel (0) target = $region5
  $region4: #{tpu_custom_call.1} parent=0 // pred_region
    _
  $region5: #{tpu_custom_call.1} parent=0 // pred_fallthru
    _
  // Predicated region
  $region6: #{tpu_custom_call.1} parent=0 // pred_check
    _
  $region7: #{tpu_custom_call.1} parent=0 // pred_check_branch
    %12 = sbr.rel (0) target = $region9
  $region8: #{tpu_custom_call.1} parent=0 // pred_region
    _
  $region9: #{tpu_custom_call.1} parent=0 // pred_fallthru
    _
  // Predicated region
  $region10: #{tpu_custom_call.1} parent=0 // pred_check
    _
  $region11: #{tpu_custom_call.1} parent=0 // pred_check_branch
    %14 = sbr.rel (0) target = $region13
  $region12: #{tpu_custom_call.1} parent=0 // pred_region
    _
  $region13: #{tpu_custom_call.1} parent=0 // pred_fallthru
    _
  // Predicated region
  $region14: #{tpu_custom_call.1} parent=0 // pred_check
    _
  $region15: #{tpu_custom_call.1} parent=0 // pred_check_branch
    %16 = sbr.rel (0) target = $region17
  $region16: #{tpu_custom_call.1} parent=0 // pred_region
    _
  $region17: #{tpu_custom_call.1} parent=0 // pred_fallthru
    _
  %v18 = vld [vmem:[%s0] sm:$0xff]
  %v19 = vld [vmem:[%s0 + $0x8] sm:$0xff]
  %v20 = vld [vmem:[%s0 + $0x10] sm:$0xff]
  %v21 = vld [vmem:[%s0 + $0x18] sm:$0xff]
  %v22 = vld [vmem:[%s0 + $0x20] sm:$0xff]
  %v23 = vld [vmem:[%s0 + $0x28] sm:$0xff]
  %v24 = vld [vmem:[%s0 + $0x30] sm:$0xff]
  %v25 = vld [vmem:[%s0 + $0x38] sm:$0xff]
  %v26 = vld [vmem:[%s0 + $0x40] sm:$0xff]
  %v27 = vld [vmem:[%s0 + $0x48] sm:$0xff]
  %v28 = vld [vmem:[%s0 + $0x50] sm:$0xff]
  %v29 = vld [vmem:[%s0 + $0x58] sm:$0xff]
  %v30 = vld [vmem:[%s0 + $0x60] sm:$0xff]
  %v31 = vld [vmem:[%s0 + $0x68] sm:$0xff]
  %v32 = vld [vmem:[%s0 + $0x70] sm:$0xff]
  %v33 = vld [vmem:[%s0 + $0x78] sm:$0xff]
  %v34 = vld [vmem:[%s0 + $0x80] sm:$0xff]
  %v35 = vld [vmem:[%s0 + $0x88] sm:$0xff]
  %v36 = vld [vmem:[%s0 + $0x90] sm:$0xff]
  %v37 = vld [vmem:[%s0 + $0x98] sm:$0xff]
  %v38 = vld [vmem:[%s0 + $0xa0] sm:$0xff]
  %v39 = vld [vmem:[%s0 + $0xa8] sm:$0xff]
  %v40 = vld [vmem:[%s0 + $0xb0] sm:$0xff]
  %v41 = vld [vmem:[%s0 + $0xb8] sm:$0xff]
  %v42 = vld [vmem:[%s0 + $0xc0] sm:$0xff]
  %v43 = vld [vmem:[%s0 + $0xc8] sm:$0xff]
  %v44 = vld [vmem:[%s0 + $0xd0] sm:$0xff]
  %v45 = vld [vmem:[%s0 + $0xd8] sm:$0xff]
  %v46 = vld [vmem:[%s0 + $0xe0] sm:$0xff]
  %v47 = vld [vmem:[%s0 + $0xe8] sm:$0xff]
  %v48 = vld [vmem:[%s0 + $0xf0] sm:$0xff]
  %v49 = vld [vmem:[%s0 + $0xf8] sm:$0xff]
  %v50 = vld [vmem:[%s0 + $0x100] sm:$0xff]
  %v51 = vld [vmem:[%s0 + $0x108] sm:$0xff]
  %v52 = vld [vmem:[%s0 + $0x110] sm:$0xff]
  %v53 = vld [vmem:[%s0 + $0x118] sm:$0xff]
  %v54 = vld [vmem:[%s0 + $0x120] sm:$0xff]
  %v55 = vld [vmem:[%s0 + $0x128] sm:$0xff]
  %v56 = vld [vmem:[%s0 + $0x130] sm:$0xff]
  %v57 = vld [vmem:[%s0 + $0x138] sm:$0xff]
  %v58 = vld [vmem:[%s0 + $0x140] sm:$0xff]
  %v59 = vld [vmem:[%s0 + $0x148] sm:$0xff]
  %v60 = vld [vmem:[%s0 + $0x150] sm:$0xff]
  %v61 = vld [vmem:[%s0 + $0x158] sm:$0xff]
  %v62 = vld [vmem:[%s0 + $0x160] sm:$0xff]
  %v63 = vld [vmem:[%s0 + $0x168] sm:$0xff]
  %v64 = vld [vmem:[%s0 + $0x170] sm:$0xff]
  %v65 = vld [vmem:[%s0 + $0x178] sm:$0xff]
  %v66 = vld [vmem:[%s0 + $0x180] sm:$0xff]
  %v67 = vld [vmem:[%s0 + $0x188] sm:$0xff]
  %v68 = vld [vmem:[%s0 + $0x190] sm:$0xff]
  %v69 = vld [vmem:[%s0 + $0x198] sm:$0xff]
  %v70 = vld [vmem:[%s0 + $0x1a0] sm:$0xff]
  %v71 = vld [vmem:[%s0 + $0x1a8] sm:$0xff]
  %v72 = vld [vmem:[%s0 + $0x1b0] sm:$0xff]
  %v73 = vld [vmem:[%s0 + $0x1b8] sm:$0xff]
  %v74 = vld [vmem:[%s0 + $0x1c0] sm:$0xff]
  %v75 = vld [vmem:[%s0 + $0x1c8] sm:$0xff]
  %v76 = vld [vmem:[%s0 + $0x1d0] sm:$0xff]
  %v77 = vld [vmem:[%s0 + $0x1d8] sm:$0xff]
  %v78 = vld [vmem:[%s0 + $0x1e0] sm:$0xff]
  %v79 = vld [vmem:[%s0 + $0x1e8] sm:$0xff]
  %v80 = vld [vmem:[%s0 + $0x1f0] sm:$0xff]
  %v81 = vld [vmem:[%s0 + $0x1f8] sm:$0xff]
  %v82 = vpack.c.bf16 %v19, %v18
  %v83 = vpack.c.bf16 %v21, %v20
  %v84 = vpack.c.bf16 %v23, %v22
  %v85 = vpack.c.bf16 %v25, %v24
  %v86 = vpack.c.bf16 %v27, %v26
  %v87 = vpack.c.bf16 %v29, %v28
  %v88 = vpack.c.bf16 %v31, %v30
  %v89 = vpack.c.bf16 %v33, %v32
  %v90 = vpack.c.bf16 %v35, %v34
  %v91 = vpack.c.bf16 %v37, %v36
  %v92 = vpack.c.bf16 %v39, %v38
  %v93 = vpack.c.bf16 %v41, %v40
  %v94 = vpack.c.bf16 %v43, %v42
  %v95 = vpack.c.bf16 %v45, %v44
  %v96 = vpack.c.bf16 %v47, %v46
  %v97 = vpack.c.bf16 %v49, %v48
  %v98 = vpack.c.bf16 %v51, %v50
  %v99 = vpack.c.bf16 %v53, %v52
  %v100 = vpack.c.bf16 %v55, %v54
  %v101 = vpack.c.bf16 %v57, %v56
  %v102 = vpack.c.bf16 %v59, %v58
  %v103 = vpack.c.bf16 %v61, %v60
  %v104 = vpack.c.bf16 %v63, %v62
  %v105 = vpack.c.bf16 %v65, %v64
  %v106 = vpack.c.bf16 %v67, %v66
  %v107 = vpack.c.bf16 %v69, %v68
  %v108 = vpack.c.bf16 %v71, %v70
  %v109 = vpack.c.bf16 %v73, %v72
  %v110 = vpack.c.bf16 %v75, %v74
  %v111 = vpack.c.bf16 %v77, %v76
  %v112 = vpack.c.bf16 %v79, %v78
  %v113 = vpack.c.bf16 %v81, %v80
  %v114 = vld [vmem:[%s1] sm:$0xf]
  %v115 = vld [vmem:[%s1 + $0x4] sm:$0xf]
  %v116 = vld [vmem:[%s1 + $0x8] sm:$0xf]
  %v117 = vld [vmem:[%s1 + $0xc] sm:$0xf]
  %v118 = vld [vmem:[%s1 + $0x10] sm:$0xf]
  %v119 = vld [vmem:[%s1 + $0x14] sm:$0xf]
  %v120 = vld [vmem:[%s1 + $0x18] sm:$0xf]
  %v121 = vld [vmem:[%s1 + $0x1c] sm:$0xf]
  %v130 = vunpack.c.l.b16 %v114
  %v131 = vunpack.c.l.b16 %v115
  %v132 = vunpack.c.l.b16 %v116
  %v133 = vunpack.c.l.b16 %v117
  %v134 = vunpack.c.l.b16 %v118
  %v135 = vunpack.c.l.b16 %v119
  %v136 = vunpack.c.l.b16 %v120
  %v137 = vunpack.c.l.b16 %v121
  %v138 = vpack.c.b16 %v131, %v130
  %v139 = vpack.c.b16 %v133, %v132
  %v140 = vpack.c.b16 %v135, %v134
  %v141 = vpack.c.b16 %v137, %v136
  %vm146 = vcmask 523264
  %v148 = vsel %vm146, %v82, 0
  %v151 = vsel %vm146, %v83, 0
  %v154 = vsel %vm146, %v84, 0
  %v157 = vsel %vm146, %v85, 0
  %v160 = vsel %vm146, %v86, 0
  %v163 = vsel %vm146, %v87, 0
  %v166 = vsel %vm146, %v88, 0
  %v169 = vsel %vm146, %v89, 0
  %v172 = vsel %vm146, %v90, 0
  %v175 = vsel %vm146, %v91, 0
  %v178 = vsel %vm146, %v92, 0
  %v181 = vsel %vm146, %v93, 0
  %v184 = vsel %vm146, %v94, 0
  %v187 = vsel %vm146, %v95, 0
  %v190 = vsel %vm146, %v96, 0
  %v193 = vsel %vm146, %v97, 0
  %v196 = vsel %vm146, %v98, 0
  %v199 = vsel %vm146, %v99, 0
  %v202 = vsel %vm146, %v100, 0
  %v205 = vsel %vm146, %v101, 0
  %v208 = vsel %vm146, %v102, 0
  %v211 = vsel %vm146, %v103, 0
  %v214 = vsel %vm146, %v104, 0
  %v217 = vsel %vm146, %v105, 0
  %v220 = vsel %vm146, %v106, 0
  %v223 = vsel %vm146, %v107, 0
  %v226 = vsel %vm146, %v108, 0
  %v229 = vsel %vm146, %v109, 0
  %v232 = vsel %vm146, %v110, 0
  %v235 = vsel %vm146, %v111, 0
  %v238 = vsel %vm146, %v112, 0
  %v241 = vsel %vm146, %v113, 0
  %243 = vmatprep.subr.bf16.mxu0 0
  %244 = vmatpush1.bf16.msra.mxu0 0
  %245 = vmatprep.subr.bf16.mxu0 0
  %246 = vmatpush1.bf16.msra.mxu0 0
  %247 = vmatprep.subr.bf16.mxu0 0
  %248 = vmatpush1.bf16.msra.mxu0 0
  %249 = vmatprep.subr.bf16.mxu0 0
  %250 = vmatpush1.bf16.msra.mxu0 0
  %251 = vmatprep.subr.bf16.mxu0 0
  %252 = vmatpush1.bf16.msra.mxu0 %v141
  %253 = vmatprep.subr.bf16.mxu0 0
  %254 = vmatpush1.bf16.msra.mxu0 %v140
  %255 = vmatprep.subr.bf16.mxu0 0
  %256 = vmatpush1.bf16.msra.mxu0 %v139
  %257 = vmatprep.subr.bf16.mxu0 0
  %258 = vmatpush1.bf16.msra.mxu0 %v138
  %259 = vmatprep.subr.bf16.mxu0 0
  %260 = vmatpush2.bf16.msra.mxu0 0
  %261 = vmatprep.subr.bf16.mxu0 0
  %262 = vmatpush2.bf16.msra.mxu0 0
  %263 = vmatprep.subr.bf16.mxu0 0
  %264 = vmatpush2.bf16.msra.mxu0 0
  %265 = vmatprep.subr.bf16.mxu0 0
  %266 = vmatpush2.bf16.msra.mxu0 0
  %267 = vmatprep.subr.bf16.mxu0 0
  %268 = vmatpush2.bf16.msra.mxu0 0
  %269 = vmatprep.subr.bf16.mxu0 0
  %270 = vmatpush2.bf16.msra.mxu0 0
  %271 = vmatprep.subr.bf16.mxu0 0
  %272 = vmatpush2.bf16.msra.mxu0 0
  %273 = vmatprep.subr.bf16.mxu0 0
  %274 = vmatpush2.bf16.msra.mxu0 0
  %275 = vmatprep.mubr.bf16.mxu0 0
  %276 = vmatmul.mubr.bf16.gmra.mxu0 %v148
  %v277 = vpop.f32.mrf.mxu0
  %v278 = vadd.f32 0.0, %v277
  %v279 = vpop.f32.mrf.mxu0
  %v280 = vpop.f32.mrf.mxu0
  %v281 = vadd.f32 0.0, %v280
  %v282 = vpop.f32.mrf.mxu0
  %283 = vmatprep.mubr.bf16.mxu0 0
  %284 = vmatmul.mubr.bf16.gmra.mxu0 %v151
  %v285 = vpop.f32.mrf.mxu0
  %v286 = vadd.f32 0.0, %v285
  %v287 = vpop.f32.mrf.mxu0
  %v288 = vpop.f32.mrf.mxu0
  %v289 = vadd.f32 0.0, %v288
  %v290 = vpop.f32.mrf.mxu0
  %291 = vmatprep.mubr.bf16.mxu0 0
  %292 = vmatmul.mubr.bf16.gmra.mxu0 %v154
  %v293 = vpop.f32.mrf.mxu0
  %v294 = vadd.f32 0.0, %v293
  %v295 = vpop.f32.mrf.mxu0
  %v296 = vpop.f32.mrf.mxu0
  %v297 = vadd.f32 0.0, %v296
  %v298 = vpop.f32.mrf.mxu0
  %299 = vmatprep.mubr.bf16.mxu0 0
  %300 = vmatmul.mubr.bf16.gmra.mxu0 %v157
  %v301 = vpop.f32.mrf.mxu0
  %v302 = vadd.f32 0.0, %v301
  %v303 = vpop.f32.mrf.mxu0
  %v304 = vpop.f32.mrf.mxu0
  %v305 = vadd.f32 0.0, %v304
  %v306 = vpop.f32.mrf.mxu0
  %307 = vmatprep.mubr.bf16.mxu0 0
  %308 = vmatmul.mubr.bf16.gmra.mxu0 %v160
  %v309 = vpop.f32.mrf.mxu0
  %v310 = vadd.f32 0.0, %v309
  %v311 = vpop.f32.mrf.mxu0
  %v312 = vpop.f32.mrf.mxu0
  %v313 = vadd.f32 0.0, %v312
  %v314 = vpop.f32.mrf.mxu0
  %315 = vmatprep.mubr.bf16.mxu0 0
  %316 = vmatmul.mubr.bf16.gmra.mxu0 %v163
  %v317 = vpop.f32.mrf.mxu0
  %v318 = vadd.f32 0.0, %v317
  %v319 = vpop.f32.mrf.mxu0
  %v320 = vpop.f32.mrf.mxu0
  %v321 = vadd.f32 0.0, %v320
  %v322 = vpop.f32.mrf.mxu0
  %323 = vmatprep.mubr.bf16.mxu0 0
  %324 = vmatmul.mubr.bf16.gmra.mxu0 %v166
  %v325 = vpop.f32.mrf.mxu0
  %v326 = vadd.f32 0.0, %v325
  %v327 = vpop.f32.mrf.mxu0
  %v328 = vpop.f32.mrf.mxu0
  %v329 = vadd.f32 0.0, %v328
  %v330 = vpop.f32.mrf.mxu0
  %331 = vmatprep.mubr.bf16.mxu0 0
  %332 = vmatmul.mubr.bf16.gmra.mxu0 %v169
  %v333 = vpop.f32.mrf.mxu0
  %v334 = vadd.f32 0.0, %v333
  %v335 = vpop.f32.mrf.mxu0
  %v336 = vpop.f32.mrf.mxu0
  %v337 = vadd.f32 0.0, %v336
  %v338 = vpop.f32.mrf.mxu0
  %339 = vmatprep.mubr.bf16.mxu0 0
  %340 = vmatmul.mubr.bf16.gmra.mxu0 %v172
  %v341 = vpop.f32.mrf.mxu0
  %v342 = vadd.f32 0.0, %v341
  %v343 = vpop.f32.mrf.mxu0
  %v344 = vpop.f32.mrf.mxu0
  %v345 = vadd.f32 0.0, %v344
  %v346 = vpop.f32.mrf.mxu0
  %347 = vmatprep.mubr.bf16.mxu0 0
  %348 = vmatmul.mubr.bf16.gmra.mxu0 %v175
  %v349 = vpop.f32.mrf.mxu0
  %v350 = vadd.f32 0.0, %v349
  %v351 = vpop.f32.mrf.mxu0
  %v352 = vpop.f32.mrf.mxu0
  %v353 = vadd.f32 0.0, %v352
  %v354 = vpop.f32.mrf.mxu0
  %355 = vmatprep.mubr.bf16.mxu0 0
  %356 = vmatmul.mubr.bf16.gmra.mxu0 %v178
  %v357 = vpop.f32.mrf.mxu0
  %v358 = vadd.f32 0.0, %v357
  %v359 = vpop.f32.mrf.mxu0
  %v360 = vpop.f32.mrf.mxu0
  %v361 = vadd.f32 0.0, %v360
  %v362 = vpop.f32.mrf.mxu0
  %363 = vmatprep.mubr.bf16.mxu0 0
  %364 = vmatmul.mubr.bf16.gmra.mxu0 %v181
  %v365 = vpop.f32.mrf.mxu0
  %v366 = vadd.f32 0.0, %v365
  %v367 = vpop.f32.mrf.mxu0
  %v368 = vpop.f32.mrf.mxu0
  %v369 = vadd.f32 0.0, %v368
  %v370 = vpop.f32.mrf.mxu0
  %371 = vmatprep.mubr.bf16.mxu0 0
  %372 = vmatmul.mubr.bf16.gmra.mxu0 %v184
  %v373 = vpop.f32.mrf.mxu0
  %v374 = vadd.f32 0.0, %v373
  %v375 = vpop.f32.mrf.mxu0
  %v376 = vpop.f32.mrf.mxu0
  %v377 = vadd.f32 0.0, %v376
  %v378 = vpop.f32.mrf.mxu0
  %379 = vmatprep.mubr.bf16.mxu0 0
  %380 = vmatmul.mubr.bf16.gmra.mxu0 %v187
  %v381 = vpop.f32.mrf.mxu0
  %v382 = vadd.f32 0.0, %v381
  %v383 = vpop.f32.mrf.mxu0
  %v384 = vpop.f32.mrf.mxu0
  %v385 = vadd.f32 0.0, %v384
  %v386 = vpop.f32.mrf.mxu0
  %387 = vmatprep.mubr.bf16.mxu0 0
  %388 = vmatmul.mubr.bf16.gmra.mxu0 %v190
  %v389 = vpop.f32.mrf.mxu0
  %v390 = vadd.f32 0.0, %v389
  %v391 = vpop.f32.mrf.mxu0
  %v392 = vpop.f32.mrf.mxu0
  %v393 = vadd.f32 0.0, %v392
  %v394 = vpop.f32.mrf.mxu0
  %395 = vmatprep.mubr.bf16.mxu0 0
  %396 = vmatmul.mubr.bf16.gmra.mxu0 %v193
  %v397 = vpop.f32.mrf.mxu0
  %v398 = vadd.f32 0.0, %v397
  %v399 = vpop.f32.mrf.mxu0
  %v400 = vpop.f32.mrf.mxu0
  %v401 = vadd.f32 0.0, %v400
  %v402 = vpop.f32.mrf.mxu0
  %403 = vmatprep.mubr.bf16.mxu0 0
  %404 = vmatmul.mubr.bf16.gmra.mxu0 %v196
  %v405 = vpop.f32.mrf.mxu0
  %v406 = vadd.f32 0.0, %v405
  %v407 = vpop.f32.mrf.mxu0
  %v408 = vpop.f32.mrf.mxu0
  %v409 = vadd.f32 0.0, %v408
  %v410 = vpop.f32.mrf.mxu0
  %411 = vmatprep.mubr.bf16.mxu0 0
  %412 = vmatmul.mubr.bf16.gmra.mxu0 %v199
  %v413 = vpop.f32.mrf.mxu0
  %v414 = vadd.f32 0.0, %v413
  %v415 = vpop.f32.mrf.mxu0
  %v416 = vpop.f32.mrf.mxu0
  %v417 = vadd.f32 0.0, %v416
  %v418 = vpop.f32.mrf.mxu0
  %419 = vmatprep.mubr.bf16.mxu0 0
  %420 = vmatmul.mubr.bf16.gmra.mxu0 %v202
  %v421 = vpop.f32.mrf.mxu0
  %v422 = vadd.f32 0.0, %v421
  %v423 = vpop.f32.mrf.mxu0
  %v424 = vpop.f32.mrf.mxu0
  %v425 = vadd.f32 0.0, %v424
  %v426 = vpop.f32.mrf.mxu0
  %427 = vmatprep.mubr.bf16.mxu0 0
  %428 = vmatmul.mubr.bf16.gmra.mxu0 %v205
  %v429 = vpop.f32.mrf.mxu0
  %v430 = vadd.f32 0.0, %v429
  %v431 = vpop.f32.mrf.mxu0
  %v432 = vpop.f32.mrf.mxu0
  %v433 = vadd.f32 0.0, %v432
  %v434 = vpop.f32.mrf.mxu0
  %435 = vmatprep.mubr.bf16.mxu0 0
  %436 = vmatmul.mubr.bf16.gmra.mxu0 %v208
  %v437 = vpop.f32.mrf.mxu0
  %v438 = vadd.f32 0.0, %v437
  %v439 = vpop.f32.mrf.mxu0
  %v440 = vpop.f32.mrf.mxu0
  %v441 = vadd.f32 0.0, %v440
  %v442 = vpop.f32.mrf.mxu0
  %443 = vmatprep.mubr.bf16.mxu0 0
  %444 = vmatmul.mubr.bf16.gmra.mxu0 %v211
  %v445 = vpop.f32.mrf.mxu0
  %v446 = vadd.f32 0.0, %v445
  %v447 = vpop.f32.mrf.mxu0
  %v448 = vpop.f32.mrf.mxu0
  %v449 = vadd.f32 0.0, %v448
  %v450 = vpop.f32.mrf.mxu0
  %451 = vmatprep.mubr.bf16.mxu0 0
  %452 = vmatmul.mubr.bf16.gmra.mxu0 %v214
  %v453 = vpop.f32.mrf.mxu0
  %v454 = vadd.f32 0.0, %v453
  %v455 = vpop.f32.mrf.mxu0
  %v456 = vpop.f32.mrf.mxu0
  %v457 = vadd.f32 0.0, %v456
  %v458 = vpop.f32.mrf.mxu0
  %459 = vmatprep.mubr.bf16.mxu0 0
  %460 = vmatmul.mubr.bf16.gmra.mxu0 %v217
  %v461 = vpop.f32.mrf.mxu0
  %v462 = vadd.f32 0.0, %v461
  %v463 = vpop.f32.mrf.mxu0
  %v464 = vpop.f32.mrf.mxu0
  %v465 = vadd.f32 0.0, %v464
  %v466 = vpop.f32.mrf.mxu0
  %467 = vmatprep.mubr.bf16.mxu0 0
  %468 = vmatmul.mubr.bf16.gmra.mxu0 %v220
  %v469 = vpop.f32.mrf.mxu0
  %v470 = vadd.f32 0.0, %v469
  %v471 = vpop.f32.mrf.mxu0
  %v472 = vpop.f32.mrf.mxu0
  %v473 = vadd.f32 0.0, %v472
  %v474 = vpop.f32.mrf.mxu0
  %475 = vmatprep.mubr.bf16.mxu0 0
  %476 = vmatmul.mubr.bf16.gmra.mxu0 %v223
  %v477 = vpop.f32.mrf.mxu0
  %v478 = vadd.f32 0.0, %v477
  %v479 = vpop.f32.mrf.mxu0
  %v480 = vpop.f32.mrf.mxu0
  %v481 = vadd.f32 0.0, %v480
  %v482 = vpop.f32.mrf.mxu0
  %483 = vmatprep.mubr.bf16.mxu0 0
  %484 = vmatmul.mubr.bf16.gmra.mxu0 %v226
  %v485 = vpop.f32.mrf.mxu0
  %v486 = vadd.f32 0.0, %v485
  %v487 = vpop.f32.mrf.mxu0
  %v488 = vpop.f32.mrf.mxu0
  %v489 = vadd.f32 0.0, %v488
  %v490 = vpop.f32.mrf.mxu0
  %491 = vmatprep.mubr.bf16.mxu0 0
  %492 = vmatmul.mubr.bf16.gmra.mxu0 %v229
  %v493 = vpop.f32.mrf.mxu0
  %v494 = vadd.f32 0.0, %v493
  %v495 = vpop.f32.mrf.mxu0
  %v496 = vpop.f32.mrf.mxu0
  %v497 = vadd.f32 0.0, %v496
  %v498 = vpop.f32.mrf.mxu0
  %499 = vmatprep.mubr.bf16.mxu0 0
  %500 = vmatmul.mubr.bf16.gmra.mxu0 %v232
  %v501 = vpop.f32.mrf.mxu0
  %v502 = vadd.f32 0.0, %v501
  %v503 = vpop.f32.mrf.mxu0
  %v504 = vpop.f32.mrf.mxu0
  %v505 = vadd.f32 0.0, %v504
  %v506 = vpop.f32.mrf.mxu0
  %507 = vmatprep.mubr.bf16.mxu0 0
  %508 = vmatmul.mubr.bf16.gmra.mxu0 %v235
  %v509 = vpop.f32.mrf.mxu0
  %v510 = vadd.f32 0.0, %v509
  %v511 = vpop.f32.mrf.mxu0
  %v512 = vpop.f32.mrf.mxu0
  %v513 = vadd.f32 0.0, %v512
  %v514 = vpop.f32.mrf.mxu0
  %515 = vmatprep.mubr.bf16.mxu0 0
  %516 = vmatmul.mubr.bf16.gmra.mxu0 %v238
  %v517 = vpop.f32.mrf.mxu0
  %v518 = vadd.f32 0.0, %v517
  %v519 = vpop.f32.mrf.mxu0
  %v520 = vpop.f32.mrf.mxu0
  %v521 = vadd.f32 0.0, %v520
  %v522 = vpop.f32.mrf.mxu0
  %523 = vmatprep.mubr.bf16.mxu0 0
  %524 = vmatmul.mubr.bf16.gmra.mxu0 %v241
  %v525 = vpop.f32.mrf.mxu0
  %v526 = vadd.f32 0.0, %v525
  %v527 = vpop.f32.mrf.mxu0
  %v528 = vpop.f32.mrf.mxu0
  %v529 = vadd.f32 0.0, %v528
  %v530 = vpop.f32.mrf.mxu0
  %531 = vdwg.mxu0
  %v532 = vld [vmem:[%s2] sm:$0x1]
  %v533 = vld [vmem:[%s3] sm:$0x1]
  %vm534 = vcmask 261120
  %v535 = vsel %vm534, %v278, 0.0
  %v536 = vsel %vm534, %v281, 0.0
  %v537 = vadd.f32 %v535, %v536
  %v538 = vsel %vm534, %v286, 0.0
  %v539 = vadd.f32 %v537, %v538
  %v540 = vsel %vm534, %v289, 0.0
  %v541 = vadd.f32 %v539, %v540
  %v542 = vsel %vm534, %v294, 0.0
  %v543 = vadd.f32 %v541, %v542
  %v544 = vsel %vm534, %v297, 0.0
  %v545 = vadd.f32 %v543, %v544
  %v546 = vsel %vm534, %v302, 0.0
  %v547 = vadd.f32 %v545, %v546
  %v548 = vsel %vm534, %v305, 0.0
  %v549 = vadd.f32 %v547, %v548
  %v550 = vsel %vm534, %v310, 0.0
  %v551 = vadd.f32 %v549, %v550
  %v552 = vsel %vm534, %v313, 0.0
  %v553 = vadd.f32 %v551, %v552
  %v554 = vsel %vm534, %v318, 0.0
  %v555 = vadd.f32 %v553, %v554
  %v556 = vsel %vm534, %v321, 0.0
  %v557 = vadd.f32 %v555, %v556
  %v558 = vsel %vm534, %v326, 0.0
  %v559 = vadd.f32 %v557, %v558
  %v560 = vsel %vm534, %v329, 0.0
  %v561 = vadd.f32 %v559, %v560
  %v562 = vsel %vm534, %v334, 0.0
  %v563 = vadd.f32 %v561, %v562
  %v564 = vsel %vm534, %v337, 0.0
  %v565 = vadd.f32 %v563, %v564
  %v566 = vsel %vm534, %v342, 0.0
  %v567 = vadd.f32 %v565, %v566
  %v568 = vsel %vm534, %v345, 0.0
  %v569 = vadd.f32 %v567, %v568
  %v570 = vsel %vm534, %v350, 0.0
  %v571 = vadd.f32 %v569, %v570
  %v572 = vsel %vm534, %v353, 0.0
  %v573 = vadd.f32 %v571, %v572
  %v574 = vsel %vm534, %v358, 0.0
  %v575 = vadd.f32 %v573, %v574
  %v576 = vsel %vm534, %v361, 0.0
  %v577 = vadd.f32 %v575, %v576
  %v578 = vsel %vm534, %v366, 0.0
  %v579 = vadd.f32 %v577, %v578
  %v580 = vsel %vm534, %v369, 0.0
  %v581 = vadd.f32 %v579, %v580
  %v582 = vsel %vm534, %v374, 0.0
  %v583 = vadd.f32 %v581, %v582
  %v584 = vsel %vm534, %v377, 0.0
  %v585 = vadd.f32 %v583, %v584
  %v586 = vsel %vm534, %v382, 0.0
  %v587 = vadd.f32 %v585, %v586
  %v588 = vsel %vm534, %v385, 0.0
  %v589 = vadd.f32 %v587, %v588
  %v590 = vsel %vm534, %v390, 0.0
  %v591 = vadd.f32 %v589, %v590
  %v592 = vsel %vm534, %v393, 0.0
  %v593 = vadd.f32 %v591, %v592
  %v594 = vsel %vm534, %v398, 0.0
  %v595 = vadd.f32 %v593, %v594
  %v596 = vsel %vm534, %v401, 0.0
  %v597 = vadd.f32 %v595, %v596
  %v598 = vsel %vm534, %v406, 0.0
  %v599 = vadd.f32 %v597, %v598
  %v600 = vsel %vm534, %v409, 0.0
  %v601 = vadd.f32 %v599, %v600
  %v602 = vsel %vm534, %v414, 0.0
  %v603 = vadd.f32 %v601, %v602
  %v604 = vsel %vm534, %v417, 0.0
  %v605 = vadd.f32 %v603, %v604
  %v606 = vsel %vm534, %v422, 0.0
  %v607 = vadd.f32 %v605, %v606
  %v608 = vsel %vm534, %v425, 0.0
  %v609 = vadd.f32 %v607, %v608
  %v610 = vsel %vm534, %v430, 0.0
  %v611 = vadd.f32 %v609, %v610
  %v612 = vsel %vm534, %v433, 0.0
  %v613 = vadd.f32 %v611, %v612
  %v614 = vsel %vm534, %v438, 0.0
  %v615 = vadd.f32 %v613, %v614
  %v616 = vsel %vm534, %v441, 0.0
  %v617 = vadd.f32 %v615, %v616
  %v618 = vsel %vm534, %v446, 0.0
  %v619 = vadd.f32 %v617, %v618
  %v620 = vsel %vm534, %v449, 0.0
  %v621 = vadd.f32 %v619, %v620
  %v622 = vsel %vm534, %v454, 0.0
  %v623 = vadd.f32 %v621, %v622
  %v624 = vsel %vm534, %v457, 0.0
  %v625 = vadd.f32 %v623, %v624
  %v626 = vsel %vm534, %v462, 0.0
  %v627 = vadd.f32 %v625, %v626
  %v628 = vsel %vm534, %v465, 0.0
  %v629 = vadd.f32 %v627, %v628
  %v630 = vsel %vm534, %v470, 0.0
  %v631 = vadd.f32 %v629, %v630
  %v632 = vsel %vm534, %v473, 0.0
  %v633 = vadd.f32 %v631, %v632
  %v634 = vsel %vm534, %v478, 0.0
  %v635 = vadd.f32 %v633, %v634
  %v636 = vsel %vm534, %v481, 0.0
  %v637 = vadd.f32 %v635, %v636
  %v638 = vsel %vm534, %v486, 0.0
  %v639 = vadd.f32 %v637, %v638
  %v640 = vsel %vm534, %v489, 0.0
  %v641 = vadd.f32 %v639, %v640
  %v642 = vsel %vm534, %v494, 0.0
  %v643 = vadd.f32 %v641, %v642
  %v644 = vsel %vm534, %v497, 0.0
  %v645 = vadd.f32 %v643, %v644
  %v646 = vsel %vm534, %v502, 0.0
  %v647 = vadd.f32 %v645, %v646
  %v648 = vsel %vm534, %v505, 0.0
  %v649 = vadd.f32 %v647, %v648
  %v650 = vsel %vm534, %v510, 0.0
  %v651 = vadd.f32 %v649, %v650
  %v652 = vsel %vm534, %v513, 0.0
  %v653 = vadd.f32 %v651, %v652
  %v654 = vsel %vm534, %v518, 0.0
  %v655 = vadd.f32 %v653, %v654
  %v656 = vsel %vm534, %v521, 0.0
  %v657 = vadd.f32 %v655, %v656
  %v658 = vsel %vm534, %v526, 0.0
  %v659 = vadd.f32 %v657, %v658
  %v660 = vsel %vm534, %v529, 0.0
  %v661 = vadd.f32 %v659, %v660
  %v662 = vrot.slane %v661, 4
  %v663 = vadd.f32 %v661, %v662
  %v664 = vrot.slane %v663, 2
  %v665 = vadd.f32 %v663, %v664
  %v666 = vrot.slane %v665, 1
  %v667 = vadd.f32 %v665, %v666
  %v668 = vrcp.pop 512.0
  %v669 = vmul.f32 %v667, %v668
  %v670 = vsub.f32 %v278, %v669
  %v671 = vsub.f32 %v281, %v669
  %v672 = vsub.f32 %v286, %v669
  %v673 = vsub.f32 %v289, %v669
  %v674 = vsub.f32 %v294, %v669
  %v675 = vsub.f32 %v297, %v669
  %v676 = vsub.f32 %v302, %v669
  %v677 = vsub.f32 %v305, %v669
  %v678 = vsub.f32 %v310, %v669
  %v679 = vsub.f32 %v313, %v669
  %v680 = vsub.f32 %v318, %v669
  %v681 = vsub.f32 %v321, %v669
  %v682 = vsub.f32 %v326, %v669
  %v683 = vsub.f32 %v329, %v669
  %v684 = vsub.f32 %v334, %v669
  %v685 = vsub.f32 %v337, %v669
  %v686 = vsub.f32 %v342, %v669
  %v687 = vsub.f32 %v345, %v669
  %v688 = vsub.f32 %v350, %v669
  %v689 = vsub.f32 %v353, %v669
  %v690 = vsub.f32 %v358, %v669
  %v691 = vsub.f32 %v361, %v669
  %v692 = vsub.f32 %v366, %v669
  %v693 = vsub.f32 %v369, %v669
  %v694 = vsub.f32 %v374, %v669
  %v695 = vsub.f32 %v377, %v669
  %v696 = vsub.f32 %v382, %v669
  %v697 = vsub.f32 %v385, %v669
  %v698 = vsub.f32 %v390, %v669
  %v699 = vsub.f32 %v393, %v669
  %v700 = vsub.f32 %v398, %v669
  %v701 = vsub.f32 %v401, %v669
  %v702 = vsub.f32 %v406, %v669
  %v703 = vsub.f32 %v409, %v669
  %v704 = vsub.f32 %v414, %v669
  %v705 = vsub.f32 %v417, %v669
  %v706 = vsub.f32 %v422, %v669
  %v707 = vsub.f32 %v425, %v669
  %v708 = vsub.f32 %v430, %v669
  %v709 = vsub.f32 %v433, %v669
  %v710 = vsub.f32 %v438, %v669
  %v711 = vsub.f32 %v441, %v669
  %v712 = vsub.f32 %v446, %v669
  %v713 = vsub.f32 %v449, %v669
  %v714 = vsub.f32 %v454, %v669
  %v715 = vsub.f32 %v457, %v669
  %v716 = vsub.f32 %v462, %v669
  %v717 = vsub.f32 %v465, %v669
  %v718 = vsub.f32 %v470, %v669
  %v719 = vsub.f32 %v473, %v669
  %v720 = vsub.f32 %v478, %v669
  %v721 = vsub.f32 %v481, %v669
  %v722 = vsub.f32 %v486, %v669
  %v723 = vsub.f32 %v489, %v669
  %v724 = vsub.f32 %v494, %v669
  %v725 = vsub.f32 %v497, %v669
  %v726 = vsub.f32 %v502, %v669
  %v727 = vsub.f32 %v505, %v669
  %v728 = vsub.f32 %v510, %v669
  %v729 = vsub.f32 %v513, %v669
  %v730 = vsub.f32 %v518, %v669
  %v731 = vsub.f32 %v521, %v669
  %v732 = vsub.f32 %v526, %v669
  %v733 = vsub.f32 %v529, %v669
  %v734 = vmul.f32 %v670, %v670
  %v735 = vmul.f32 %v671, %v671
  %v736 = vmul.f32 %v672, %v672
  %v737 = vmul.f32 %v673, %v673
  %v738 = vmul.f32 %v674, %v674
  %v739 = vmul.f32 %v675, %v675
  %v740 = vmul.f32 %v676, %v676
  %v741 = vmul.f32 %v677, %v677
  %v742 = vmul.f32 %v678, %v678
  %v743 = vmul.f32 %v679, %v679
  %v744 = vmul.f32 %v680, %v680
  %v745 = vmul.f32 %v681, %v681
  %v746 = vmul.f32 %v682, %v682
  %v747 = vmul.f32 %v683, %v683
  %v748 = vmul.f32 %v684, %v684
  %v749 = vmul.f32 %v685, %v685
  %v750 = vmul.f32 %v686, %v686
  %v751 = vmul.f32 %v687, %v687
  %v752 = vmul.f32 %v688, %v688
  %v753 = vmul.f32 %v689, %v689
  %v754 = vmul.f32 %v690, %v690
  %v755 = vmul.f32 %v691, %v691
  %v756 = vmul.f32 %v692, %v692
  %v757 = vmul.f32 %v693, %v693
  %v758 = vmul.f32 %v694, %v694
  %v759 = vmul.f32 %v695, %v695
  %v760 = vmul.f32 %v696, %v696
  %v761 = vmul.f32 %v697, %v697
  %v762 = vmul.f32 %v698, %v698
  %v763 = vmul.f32 %v699, %v699
  %v764 = vmul.f32 %v700, %v700
  %v765 = vmul.f32 %v701, %v701
  %v766 = vmul.f32 %v702, %v702
  %v767 = vmul.f32 %v703, %v703
  %v768 = vmul.f32 %v704, %v704
  %v769 = vmul.f32 %v705, %v705
  %v770 = vmul.f32 %v706, %v706
  %v771 = vmul.f32 %v707, %v707
  %v772 = vmul.f32 %v708, %v708
  %v773 = vmul.f32 %v709, %v709
  %v774 = vmul.f32 %v710, %v710
  %v775 = vmul.f32 %v711, %v711
  %v776 = vmul.f32 %v712, %v712
  %v777 = vmul.f32 %v713, %v713
  %v778 = vmul.f32 %v714, %v714
  %v779 = vmul.f32 %v715, %v715
  %v780 = vmul.f32 %v716, %v716
  %v781 = vmul.f32 %v717, %v717
  %v782 = vmul.f32 %v718, %v718
  %v783 = vmul.f32 %v719, %v719
  %v784 = vmul.f32 %v720, %v720
  %v785 = vmul.f32 %v721, %v721
  %v786 = vmul.f32 %v722, %v722
  %v787 = vmul.f32 %v723, %v723
  %v788 = vmul.f32 %v724, %v724
  %v789 = vmul.f32 %v725, %v725
  %v790 = vmul.f32 %v726, %v726
  %v791 = vmul.f32 %v727, %v727
  %v792 = vmul.f32 %v728, %v728
  %v793 = vmul.f32 %v729, %v729
  %v794 = vmul.f32 %v730, %v730
  %v795 = vmul.f32 %v731, %v731
  %v796 = vmul.f32 %v732, %v732
  %v797 = vmul.f32 %v733, %v733
  %v798 = vsel %vm534, %v734, 0.0
  %v799 = vsel %vm534, %v735, 0.0
  %v800 = vadd.f32 %v798, %v799
  %v801 = vsel %vm534, %v736, 0.0
  %v802 = vadd.f32 %v800, %v801
  %v803 = vsel %vm534, %v737, 0.0
  %v804 = vadd.f32 %v802, %v803
  %v805 = vsel %vm534, %v738, 0.0
  %v806 = vadd.f32 %v804, %v805
  %v807 = vsel %vm534, %v739, 0.0
  %v808 = vadd.f32 %v806, %v807
  %v809 = vsel %vm534, %v740, 0.0
  %v810 = vadd.f32 %v808, %v809
  %v811 = vsel %vm534, %v741, 0.0
  %v812 = vadd.f32 %v810, %v811
  %v813 = vsel %vm534, %v742, 0.0
  %v814 = vadd.f32 %v812, %v813
  %v815 = vsel %vm534, %v743, 0.0
  %v816 = vadd.f32 %v814, %v815
  %v817 = vsel %vm534, %v744, 0.0
  %v818 = vadd.f32 %v816, %v817
  %v819 = vsel %vm534, %v745, 0.0
  %v820 = vadd.f32 %v818, %v819
  %v821 = vsel %vm534, %v746, 0.0
  %v822 = vadd.f32 %v820, %v821
  %v823 = vsel %vm534, %v747, 0.0
  %v824 = vadd.f32 %v822, %v823
  %v825 = vsel %vm534, %v748, 0.0
  %v826 = vadd.f32 %v824, %v825
  %v827 = vsel %vm534, %v749, 0.0
  %v828 = vadd.f32 %v826, %v827
  %v829 = vsel %vm534, %v750, 0.0
  %v830 = vadd.f32 %v828, %v829
  %v831 = vsel %vm534, %v751, 0.0
  %v832 = vadd.f32 %v830, %v831
  %v833 = vsel %vm534, %v752, 0.0
  %v834 = vadd.f32 %v832, %v833
  %v835 = vsel %vm534, %v753, 0.0
  %v836 = vadd.f32 %v834, %v835
  %v837 = vsel %vm534, %v754, 0.0
  %v838 = vadd.f32 %v836, %v837
  %v839 = vsel %vm534, %v755, 0.0
  %v840 = vadd.f32 %v838, %v839
  %v841 = vsel %vm534, %v756, 0.0
  %v842 = vadd.f32 %v840, %v841
  %v843 = vsel %vm534, %v757, 0.0
  %v844 = vadd.f32 %v842, %v843
  %v845 = vsel %vm534, %v758, 0.0
  %v846 = vadd.f32 %v844, %v845
  %v847 = vsel %vm534, %v759, 0.0
  %v848 = vadd.f32 %v846, %v847
  %v849 = vsel %vm534, %v760, 0.0
  %v850 = vadd.f32 %v848, %v849
  %v851 = vsel %vm534, %v761, 0.0
  %v852 = vadd.f32 %v850, %v851
  %v853 = vsel %vm534, %v762, 0.0
  %v854 = vadd.f32 %v852, %v853
  %v855 = vsel %vm534, %v763, 0.0
  %v856 = vadd.f32 %v854, %v855
  %v857 = vsel %vm534, %v764, 0.0
  %v858 = vadd.f32 %v856, %v857
  %v859 = vsel %vm534, %v765, 0.0
  %v860 = vadd.f32 %v858, %v859
  %v861 = vsel %vm534, %v766, 0.0
  %v862 = vadd.f32 %v860, %v861
  %v863 = vsel %vm534, %v767, 0.0
  %v864 = vadd.f32 %v862, %v863
  %v865 = vsel %vm534, %v768, 0.0
  %v866 = vadd.f32 %v864, %v865
  %v867 = vsel %vm534, %v769, 0.0
  %v868 = vadd.f32 %v866, %v867
  %v869 = vsel %vm534, %v770, 0.0
  %v870 = vadd.f32 %v868, %v869
  %v871 = vsel %vm534, %v771, 0.0
  %v872 = vadd.f32 %v870, %v871
  %v873 = vsel %vm534, %v772, 0.0
  %v874 = vadd.f32 %v872, %v873
  %v875 = vsel %vm534, %v773, 0.0
  %v876 = vadd.f32 %v874, %v875
  %v877 = vsel %vm534, %v774, 0.0
  %v878 = vadd.f32 %v876, %v877
  %v879 = vsel %vm534, %v775, 0.0
  %v880 = vadd.f32 %v878, %v879
  %v881 = vsel %vm534, %v776, 0.0
  %v882 = vadd.f32 %v880, %v881
  %v883 = vsel %vm534, %v777, 0.0
  %v884 = vadd.f32 %v882, %v883
  %v885 = vsel %vm534, %v778, 0.0
  %v886 = vadd.f32 %v884, %v885
  %v887 = vsel %vm534, %v779, 0.0
  %v888 = vadd.f32 %v886, %v887
  %v889 = vsel %vm534, %v780, 0.0
  %v890 = vadd.f32 %v888, %v889
  %v891 = vsel %vm534, %v781, 0.0
  %v892 = vadd.f32 %v890, %v891
  %v893 = vsel %vm534, %v782, 0.0
  %v894 = vadd.f32 %v892, %v893
  %v895 = vsel %vm534, %v783, 0.0
  %v896 = vadd.f32 %v894, %v895
  %v897 = vsel %vm534, %v784, 0.0
  %v898 = vadd.f32 %v896, %v897
  %v899 = vsel %vm534, %v785, 0.0
  %v900 = vadd.f32 %v898, %v899
  %v901 = vsel %vm534, %v786, 0.0
  %v902 = vadd.f32 %v900, %v901
  %v903 = vsel %vm534, %v787, 0.0
  %v904 = vadd.f32 %v902, %v903
  %v905 = vsel %vm534, %v788, 0.0
  %v906 = vadd.f32 %v904, %v905
  %v907 = vsel %vm534, %v789, 0.0
  %v908 = vadd.f32 %v906, %v907
  %v909 = vsel %vm534, %v790, 0.0
  %v910 = vadd.f32 %v908, %v909
  %v911 = vsel %vm534, %v791, 0.0
  %v912 = vadd.f32 %v910, %v911
  %v913 = vsel %vm534, %v792, 0.0
  %v914 = vadd.f32 %v912, %v913
  %v915 = vsel %vm534, %v793, 0.0
  %v916 = vadd.f32 %v914, %v915
  %v917 = vsel %vm534, %v794, 0.0
  %v918 = vadd.f32 %v916, %v917
  %v919 = vsel %vm534, %v795, 0.0
  %v920 = vadd.f32 %v918, %v919
  %v921 = vsel %vm534, %v796, 0.0
  %v922 = vadd.f32 %v920, %v921
  %v923 = vsel %vm534, %v797, 0.0
  %v924 = vadd.f32 %v922, %v923
  %v925 = vrot.slane %v924, 4
  %v926 = vadd.f32 %v924, %v925
  %v927 = vrot.slane %v926, 2
  %v928 = vadd.f32 %v926, %v927
  %v929 = vrot.slane %v928, 1
  %v930 = vadd.f32 %v928, %v929
  %v931 = vmul.f32 %v930, %v668
  %v932 = vadd.f32 %v931, 1e-05
  %v933 = vrsqrt.pop %v932
  %v934 = vmul.f32 %v670, %v933
  %v935 = vmul.f32 %v671, %v933
  %v936 = vmul.f32 %v672, %v933
  %v937 = vmul.f32 %v673, %v933
  %v938 = vmul.f32 %v674, %v933
  %v939 = vmul.f32 %v675, %v933
  %v940 = vmul.f32 %v676, %v933
  %v941 = vmul.f32 %v677, %v933
  %v942 = vmul.f32 %v678, %v933
  %v943 = vmul.f32 %v679, %v933
  %v944 = vmul.f32 %v680, %v933
  %v945 = vmul.f32 %v681, %v933
  %v946 = vmul.f32 %v682, %v933
  %v947 = vmul.f32 %v683, %v933
  %v948 = vmul.f32 %v684, %v933
  %v949 = vmul.f32 %v685, %v933
  %v950 = vmul.f32 %v686, %v933
  %v951 = vmul.f32 %v687, %v933
  %v952 = vmul.f32 %v688, %v933
  %v953 = vmul.f32 %v689, %v933
  %v954 = vmul.f32 %v690, %v933
  %v955 = vmul.f32 %v691, %v933
  %v956 = vmul.f32 %v692, %v933
  %v957 = vmul.f32 %v693, %v933
  %v958 = vmul.f32 %v694, %v933
  %v959 = vmul.f32 %v695, %v933
  %v960 = vmul.f32 %v696, %v933
  %v961 = vmul.f32 %v697, %v933
  %v962 = vmul.f32 %v698, %v933
  %v963 = vmul.f32 %v699, %v933
  %v964 = vmul.f32 %v700, %v933
  %v965 = vmul.f32 %v701, %v933
  %v966 = vmul.f32 %v702, %v933
  %v967 = vmul.f32 %v703, %v933
  %v968 = vmul.f32 %v704, %v933
  %v969 = vmul.f32 %v705, %v933
  %v970 = vmul.f32 %v706, %v933
  %v971 = vmul.f32 %v707, %v933
  %v972 = vmul.f32 %v708, %v933
  %v973 = vmul.f32 %v709, %v933
  %v974 = vmul.f32 %v710, %v933
  %v975 = vmul.f32 %v711, %v933
  %v976 = vmul.f32 %v712, %v933
  %v977 = vmul.f32 %v713, %v933
  %v978 = vmul.f32 %v714, %v933
  %v979 = vmul.f32 %v715, %v933
  %v980 = vmul.f32 %v716, %v933
  %v981 = vmul.f32 %v717, %v933
  %v982 = vmul.f32 %v718, %v933
  %v983 = vmul.f32 %v719, %v933
  %v984 = vmul.f32 %v720, %v933
  %v985 = vmul.f32 %v721, %v933
  %v986 = vmul.f32 %v722, %v933
  %v987 = vmul.f32 %v723, %v933
  %v988 = vmul.f32 %v724, %v933
  %v989 = vmul.f32 %v725, %v933
  %v990 = vmul.f32 %v726, %v933
  %v991 = vmul.f32 %v727, %v933
  %v992 = vmul.f32 %v728, %v933
  %v993 = vmul.f32 %v729, %v933
  %v994 = vmul.f32 %v730, %v933
  %v995 = vmul.f32 %v731, %v933
  %v996 = vmul.f32 %v732, %v933
  %v997 = vmul.f32 %v733, %v933
  %v999 = vlaneseq
  %v1000 = vshrl.u32 %v999, 7
  %v1001 = vsub.s32 0, %v1000
  %v1002 = vrot.slane %v532, %v1001
  %v1004 = vmul.f32 %v934, %v1002
  %v1005 = vmul.f32 %v935, %v1002
  %v1006 = vmul.f32 %v936, %v1002
  %v1007 = vmul.f32 %v937, %v1002
  %v1008 = vmul.f32 %v938, %v1002
  %v1009 = vmul.f32 %v939, %v1002
  %v1010 = vmul.f32 %v940, %v1002
  %v1011 = vmul.f32 %v941, %v1002
  %v1012 = vmul.f32 %v942, %v1002
  %v1013 = vmul.f32 %v943, %v1002
  %v1014 = vmul.f32 %v944, %v1002
  %v1015 = vmul.f32 %v945, %v1002
  %v1016 = vmul.f32 %v946, %v1002
  %v1017 = vmul.f32 %v947, %v1002
  %v1018 = vmul.f32 %v948, %v1002
  %v1019 = vmul.f32 %v949, %v1002
  %v1020 = vmul.f32 %v950, %v1002
  %v1021 = vmul.f32 %v951, %v1002
  %v1022 = vmul.f32 %v952, %v1002
  %v1023 = vmul.f32 %v953, %v1002
  %v1024 = vmul.f32 %v954, %v1002
  %v1025 = vmul.f32 %v955, %v1002
  %v1026 = vmul.f32 %v956, %v1002
  %v1027 = vmul.f32 %v957, %v1002
  %v1028 = vmul.f32 %v958, %v1002
  %v1029 = vmul.f32 %v959, %v1002
  %v1030 = vmul.f32 %v960, %v1002
  %v1031 = vmul.f32 %v961, %v1002
  %v1032 = vmul.f32 %v962, %v1002
  %v1033 = vmul.f32 %v963, %v1002
  %v1034 = vmul.f32 %v964, %v1002
  %v1035 = vmul.f32 %v965, %v1002
  %v1036 = vmul.f32 %v966, %v1002
  %v1037 = vmul.f32 %v967, %v1002
  %v1038 = vmul.f32 %v968, %v1002
  %v1039 = vmul.f32 %v969, %v1002
  %v1040 = vmul.f32 %v970, %v1002
  %v1041 = vmul.f32 %v971, %v1002
  %v1042 = vmul.f32 %v972, %v1002
  %v1043 = vmul.f32 %v973, %v1002
  %v1044 = vmul.f32 %v974, %v1002
  %v1045 = vmul.f32 %v975, %v1002
  %v1046 = vmul.f32 %v976, %v1002
  %v1047 = vmul.f32 %v977, %v1002
  %v1048 = vmul.f32 %v978, %v1002
  %v1049 = vmul.f32 %v979, %v1002
  %v1050 = vmul.f32 %v980, %v1002
  %v1051 = vmul.f32 %v981, %v1002
  %v1052 = vmul.f32 %v982, %v1002
  %v1053 = vmul.f32 %v983, %v1002
  %v1054 = vmul.f32 %v984, %v1002
  %v1055 = vmul.f32 %v985, %v1002
  %v1056 = vmul.f32 %v986, %v1002
  %v1057 = vmul.f32 %v987, %v1002
  %v1058 = vmul.f32 %v988, %v1002
  %v1059 = vmul.f32 %v989, %v1002
  %v1060 = vmul.f32 %v990, %v1002
  %v1061 = vmul.f32 %v991, %v1002
  %v1062 = vmul.f32 %v992, %v1002
  %v1063 = vmul.f32 %v993, %v1002
  %v1064 = vmul.f32 %v994, %v1002
  %v1065 = vmul.f32 %v995, %v1002
  %v1066 = vmul.f32 %v996, %v1002
  %v1067 = vmul.f32 %v997, %v1002
  %v1069 = vlaneseq
  %v1070 = vshrl.u32 %v1069, 7
  %v1071 = vsub.s32 0, %v1070
  %v1072 = vrot.slane %v533, %v1071
  %v1074 = vadd.f32 %v1004, %v1072
  %v1075 = vadd.f32 %v1005, %v1072
  %v1076 = vadd.f32 %v1006, %v1072
  %v1077 = vadd.f32 %v1007, %v1072
  %v1078 = vadd.f32 %v1008, %v1072
  %v1079 = vadd.f32 %v1009, %v1072
  %v1080 = vadd.f32 %v1010, %v1072
  %v1081 = vadd.f32 %v1011, %v1072
  %v1082 = vadd.f32 %v1012, %v1072
  %v1083 = vadd.f32 %v1013, %v1072
  %v1084 = vadd.f32 %v1014, %v1072
  %v1085 = vadd.f32 %v1015, %v1072
  %v1086 = vadd.f32 %v1016, %v1072
  %v1087 = vadd.f32 %v1017, %v1072
  %v1088 = vadd.f32 %v1018, %v1072
  %v1089 = vadd.f32 %v1019, %v1072
  %v1090 = vadd.f32 %v1020, %v1072
  %v1091 = vadd.f32 %v1021, %v1072
  %v1092 = vadd.f32 %v1022, %v1072
  %v1093 = vadd.f32 %v1023, %v1072
  %v1094 = vadd.f32 %v1024, %v1072
  %v1095 = vadd.f32 %v1025, %v1072
  %v1096 = vadd.f32 %v1026, %v1072
  %v1097 = vadd.f32 %v1027, %v1072
  %v1098 = vadd.f32 %v1028, %v1072
  %v1099 = vadd.f32 %v1029, %v1072
  %v1100 = vadd.f32 %v1030, %v1072
  %v1101 = vadd.f32 %v1031, %v1072
  %v1102 = vadd.f32 %v1032, %v1072
  %v1103 = vadd.f32 %v1033, %v1072
  %v1104 = vadd.f32 %v1034, %v1072
  %v1105 = vadd.f32 %v1035, %v1072
  %v1106 = vadd.f32 %v1036, %v1072
  %v1107 = vadd.f32 %v1037, %v1072
  %v1108 = vadd.f32 %v1038, %v1072
  %v1109 = vadd.f32 %v1039, %v1072
  %v1110 = vadd.f32 %v1040, %v1072
  %v1111 = vadd.f32 %v1041, %v1072
  %v1112 = vadd.f32 %v1042, %v1072
  %v1113 = vadd.f32 %v1043, %v1072
  %v1114 = vadd.f32 %v1044, %v1072
  %v1115 = vadd.f32 %v1045, %v1072
  %v1116 = vadd.f32 %v1046, %v1072
  %v1117 = vadd.f32 %v1047, %v1072
  %v1118 = vadd.f32 %v1048, %v1072
  %v1119 = vadd.f32 %v1049, %v1072
  %v1120 = vadd.f32 %v1050, %v1072
  %v1121 = vadd.f32 %v1051, %v1072
  %v1122 = vadd.f32 %v1052, %v1072
  %v1123 = vadd.f32 %v1053, %v1072
  %v1124 = vadd.f32 %v1054, %v1072
  %v1125 = vadd.f32 %v1055, %v1072
  %v1126 = vadd.f32 %v1056, %v1072
  %v1127 = vadd.f32 %v1057, %v1072
  %v1128 = vadd.f32 %v1058, %v1072
  %v1129 = vadd.f32 %v1059, %v1072
  %v1130 = vadd.f32 %v1060, %v1072
  %v1131 = vadd.f32 %v1061, %v1072
  %v1132 = vadd.f32 %v1062, %v1072
  %v1133 = vadd.f32 %v1063, %v1072
  %v1134 = vadd.f32 %v1064, %v1072
  %v1135 = vadd.f32 %v1065, %v1072
  %v1136 = vadd.f32 %v1066, %v1072
  %v1137 = vadd.f32 %v1067, %v1072
  %v1138 = vmax.f32 %v1074, 0.0
  %v1139 = vmax.f32 %v1075, 0.0
  %v1140 = vmax.f32 %v1076, 0.0
  %v1141 = vmax.f32 %v1077, 0.0
  %v1142 = vmax.f32 %v1078, 0.0
  %v1143 = vmax.f32 %v1079, 0.0
  %v1144 = vmax.f32 %v1080, 0.0
  %v1145 = vmax.f32 %v1081, 0.0
  %v1146 = vmax.f32 %v1082, 0.0
  %v1147 = vmax.f32 %v1083, 0.0
  %v1148 = vmax.f32 %v1084, 0.0
  %v1149 = vmax.f32 %v1085, 0.0
  %v1150 = vmax.f32 %v1086, 0.0
  %v1151 = vmax.f32 %v1087, 0.0
  %v1152 = vmax.f32 %v1088, 0.0
  %v1153 = vmax.f32 %v1089, 0.0
  %v1154 = vmax.f32 %v1090, 0.0
  %v1155 = vmax.f32 %v1091, 0.0
  %v1156 = vmax.f32 %v1092, 0.0
  %v1157 = vmax.f32 %v1093, 0.0
  %v1158 = vmax.f32 %v1094, 0.0
  %v1159 = vmax.f32 %v1095, 0.0
  %v1160 = vmax.f32 %v1096, 0.0
  %v1161 = vmax.f32 %v1097, 0.0
  %v1162 = vmax.f32 %v1098, 0.0
  %v1163 = vmax.f32 %v1099, 0.0
  %v1164 = vmax.f32 %v1100, 0.0
  %v1165 = vmax.f32 %v1101, 0.0
  %v1166 = vmax.f32 %v1102, 0.0
  %v1167 = vmax.f32 %v1103, 0.0
  %v1168 = vmax.f32 %v1104, 0.0
  %v1169 = vmax.f32 %v1105, 0.0
  %v1170 = vmax.f32 %v1106, 0.0
  %v1171 = vmax.f32 %v1107, 0.0
  %v1172 = vmax.f32 %v1108, 0.0
  %v1173 = vmax.f32 %v1109, 0.0
  %v1174 = vmax.f32 %v1110, 0.0
  %v1175 = vmax.f32 %v1111, 0.0
  %v1176 = vmax.f32 %v1112, 0.0
  %v1177 = vmax.f32 %v1113, 0.0
  %v1178 = vmax.f32 %v1114, 0.0
  %v1179 = vmax.f32 %v1115, 0.0
  %v1180 = vmax.f32 %v1116, 0.0
  %v1181 = vmax.f32 %v1117, 0.0
  %v1182 = vmax.f32 %v1118, 0.0
  %v1183 = vmax.f32 %v1119, 0.0
  %v1184 = vmax.f32 %v1120, 0.0
  %v1185 = vmax.f32 %v1121, 0.0
  %v1186 = vmax.f32 %v1122, 0.0
  %v1187 = vmax.f32 %v1123, 0.0
  %v1188 = vmax.f32 %v1124, 0.0
  %v1189 = vmax.f32 %v1125, 0.0
  %v1190 = vmax.f32 %v1126, 0.0
  %v1191 = vmax.f32 %v1127, 0.0
  %v1192 = vmax.f32 %v1128, 0.0
  %v1193 = vmax.f32 %v1129, 0.0
  %v1194 = vmax.f32 %v1130, 0.0
  %v1195 = vmax.f32 %v1131, 0.0
  %v1196 = vmax.f32 %v1132, 0.0
  %v1197 = vmax.f32 %v1133, 0.0
  %v1198 = vmax.f32 %v1134, 0.0
  %v1199 = vmax.f32 %v1135, 0.0
  %v1200 = vmax.f32 %v1136, 0.0
  %v1201 = vmax.f32 %v1137, 0.0
  %1202 = vst.msk [vmem:[%s4] sm:$0xff] %vm534, %v1138
  %1203 = vst.msk [vmem:[%s4 + $0x8] sm:$0xff] %vm534, %v1139
  %1204 = vst.msk [vmem:[%s4 + $0x10] sm:$0xff] %vm534, %v1140
  %1205 = vst.msk [vmem:[%s4 + $0x18] sm:$0xff] %vm534, %v1141
  %1206 = vst.msk [vmem:[%s4 + $0x20] sm:$0xff] %vm534, %v1142
  %1207 = vst.msk [vmem:[%s4 + $0x28] sm:$0xff] %vm534, %v1143
  %1208 = vst.msk [vmem:[%s4 + $0x30] sm:$0xff] %vm534, %v1144
  %1209 = vst.msk [vmem:[%s4 + $0x38] sm:$0xff] %vm534, %v1145
  %1210 = vst.msk [vmem:[%s4 + $0x40] sm:$0xff] %vm534, %v1146
  %1211 = vst.msk [vmem:[%s4 + $0x48] sm:$0xff] %vm534, %v1147
  %1212 = vst.msk [vmem:[%s4 + $0x50] sm:$0xff] %vm534, %v1148
  %1213 = vst.msk [vmem:[%s4 + $0x58] sm:$0xff] %vm534, %v1149
  %1214 = vst.msk [vmem:[%s4 + $0x60] sm:$0xff] %vm534, %v1150
  %1215 = vst.msk [vmem:[%s4 + $0x68] sm:$0xff] %vm534, %v1151
  %1216 = vst.msk [vmem:[%s4 + $0x70] sm:$0xff] %vm534, %v1152
  %1217 = vst.msk [vmem:[%s4 + $0x78] sm:$0xff] %vm534, %v1153
  %1218 = vst.msk [vmem:[%s4 + $0x80] sm:$0xff] %vm534, %v1154
  %1219 = vst.msk [vmem:[%s4 + $0x88] sm:$0xff] %vm534, %v1155
  %1220 = vst.msk [vmem:[%s4 + $0x90] sm:$0xff] %vm534, %v1156
  %1221 = vst.msk [vmem:[%s4 + $0x98] sm:$0xff] %vm534, %v1157
  %1222 = vst.msk [vmem:[%s4 + $0xa0] sm:$0xff] %vm534, %v1158
  %1223 = vst.msk [vmem:[%s4 + $0xa8] sm:$0xff] %vm534, %v1159
  %1224 = vst.msk [vmem:[%s4 + $0xb0] sm:$0xff] %vm534, %v1160
  %1225 = vst.msk [vmem:[%s4 + $0xb8] sm:$0xff] %vm534, %v1161
  %1226 = vst.msk [vmem:[%s4 + $0xc0] sm:$0xff] %vm534, %v1162
  %1227 = vst.msk [vmem:[%s4 + $0xc8] sm:$0xff] %vm534, %v1163
  %1228 = vst.msk [vmem:[%s4 + $0xd0] sm:$0xff] %vm534, %v1164
  %1229 = vst.msk [vmem:[%s4 + $0xd8] sm:$0xff] %vm534, %v1165
  %1230 = vst.msk [vmem:[%s4 + $0xe0] sm:$0xff] %vm534, %v1166
  %1231 = vst.msk [vmem:[%s4 + $0xe8] sm:$0xff] %vm534, %v1167
  %1232 = vst.msk [vmem:[%s4 + $0xf0] sm:$0xff] %vm534, %v1168
  %1233 = vst.msk [vmem:[%s4 + $0xf8] sm:$0xff] %vm534, %v1169
  %1234 = vst.msk [vmem:[%s4 + $0x100] sm:$0xff] %vm534, %v1170
  %1235 = vst.msk [vmem:[%s4 + $0x108] sm:$0xff] %vm534, %v1171
  %1236 = vst.msk [vmem:[%s4 + $0x110] sm:$0xff] %vm534, %v1172
  %1237 = vst.msk [vmem:[%s4 + $0x118] sm:$0xff] %vm534, %v1173
  %1238 = vst.msk [vmem:[%s4 + $0x120] sm:$0xff] %vm534, %v1174
  %1239 = vst.msk [vmem:[%s4 + $0x128] sm:$0xff] %vm534, %v1175
  %1240 = vst.msk [vmem:[%s4 + $0x130] sm:$0xff] %vm534, %v1176
  %1241 = vst.msk [vmem:[%s4 + $0x138] sm:$0xff] %vm534, %v1177
  %1242 = vst.msk [vmem:[%s4 + $0x140] sm:$0xff] %vm534, %v1178
  %1243 = vst.msk [vmem:[%s4 + $0x148] sm:$0xff] %vm534, %v1179
  %1244 = vst.msk [vmem:[%s4 + $0x150] sm:$0xff] %vm534, %v1180
  %1245 = vst.msk [vmem:[%s4 + $0x158] sm:$0xff] %vm534, %v1181
  %1246 = vst.msk [vmem:[%s4 + $0x160] sm:$0xff] %vm534, %v1182
  %1247 = vst.msk [vmem:[%s4 + $0x168] sm:$0xff] %vm534, %v1183
  %1248 = vst.msk [vmem:[%s4 + $0x170] sm:$0xff] %vm534, %v1184
  %1249 = vst.msk [vmem:[%s4 + $0x178] sm:$0xff] %vm534, %v1185
  %1250 = vst.msk [vmem:[%s4 + $0x180] sm:$0xff] %vm534, %v1186
  %1251 = vst.msk [vmem:[%s4 + $0x188] sm:$0xff] %vm534, %v1187
  %1252 = vst.msk [vmem:[%s4 + $0x190] sm:$0xff] %vm534, %v1188
  %1253 = vst.msk [vmem:[%s4 + $0x198] sm:$0xff] %vm534, %v1189
  %1254 = vst.msk [vmem:[%s4 + $0x1a0] sm:$0xff] %vm534, %v1190
  %1255 = vst.msk [vmem:[%s4 + $0x1a8] sm:$0xff] %vm534, %v1191
  %1256 = vst.msk [vmem:[%s4 + $0x1b0] sm:$0xff] %vm534, %v1192
  %1257 = vst.msk [vmem:[%s4 + $0x1b8] sm:$0xff] %vm534, %v1193
  %1258 = vst.msk [vmem:[%s4 + $0x1c0] sm:$0xff] %vm534, %v1194
  %1259 = vst.msk [vmem:[%s4 + $0x1c8] sm:$0xff] %vm534, %v1195
  %1260 = vst.msk [vmem:[%s4 + $0x1d0] sm:$0xff] %vm534, %v1196
  %1261 = vst.msk [vmem:[%s4 + $0x1d8] sm:$0xff] %vm534, %v1197
  %1262 = vst.msk [vmem:[%s4 + $0x1e0] sm:$0xff] %vm534, %v1198
  %1263 = vst.msk [vmem:[%s4 + $0x1e8] sm:$0xff] %vm534, %v1199
  %1264 = vst.msk [vmem:[%s4 + $0x1f0] sm:$0xff] %vm534, %v1200
  %1265 = vst.msk [vmem:[%s4 + $0x1f8] sm:$0xff] %vm534, %v1201
  // Predicated region
  $region18: #{tpu_custom_call.1} parent=0 // pred_check
    _
  $region19: #{tpu_custom_call.1} parent=0 // pred_check_branch
    %1267 = sbr.rel (0) target = $region21
  $region20: #{tpu_custom_call.1} parent=0 // pred_region
    _
  $region21: #{tpu_custom_call.1} parent=0 // pred_fallthru
    _
  // Predicated region
  $region22: #{tpu_custom_call.1} parent=0 // pred_check
    _
  $region23: #{tpu_custom_call.1} parent=0 // pred_check_branch
    %1269 = sbr.rel (0) target = $region25
  $region24: #{tpu_custom_call.1} parent=0 // pred_region
    _
  $region25: #{tpu_custom_call.1} parent=0 // pred_fallthru
    _

</llo_original>
